<compile_context>
chip_gen: v7x
topology: tpu7x:2x2x1
jax: 0.10.0
libtpu: 0.0.40
codegen_flags: <defaults>
</compile_context>

<pallas_src>
import jax
import jax.numpy as jnp
from jax.experimental import pallas as pl
from jax.experimental.pallas import tpu as pltpu

LANE = 128
_MIB = 1024 * 1024


def _round_up(x, m):
    return ((x + m - 1) // m) * m


def _pick_tile(n_p, cap=512):
    # n_p is always a multiple of 128; pick the largest dividing tile <= cap.
    for t in (1024, 512, 256, 128):
        if t <= cap and n_p % t == 0:
            return t
    return n_p


def _pad2(a, r_p, c_p):
    r, c = a.shape
    return jnp.pad(a, ((0, r_p - r), (0, c_p - c)))


def _pad1(a, n_p):
    return jnp.pad(a, (0, n_p - a.shape[0]))


def _compiler_params(semantics, bytes_needed):
    # Explicit scoped-VMEM limit: v5e default is 16 MiB, v6e/v7x 32 MiB. The limit is a
    # ceiling (not a reservation), so raising it to cover the actual tile footprint is
    # safe on every generation; cap at 64 MiB (v7x physical VMEM).
    limit = int(min(max(2 * int(bytes_needed), 32 * _MIB), 64 * _MIB))
    return pltpu.CompilerParams(dimension_semantics=semantics,
                                vmem_limit_bytes=limit)


# ------------------------------------------------------------------ Pallas kernels

def _project_kernel(x_ref, w_ref, b_ref, y_ref):
    # Y_tile = X_tile @ W_tile + b_tile   (bf16 inputs, fp32 accumulate, bf16 out)
    acc = jnp.dot(x_ref[...], w_ref[...], preferred_element_type=jnp.float32)
    y_ref[...] = (acc + b_ref[...]).astype(y_ref.dtype)


def rgcn_project(x_p, w_big_bf16, b_row_f32):
    """x_p: [N_p, Din_p]; w: [Din_p, cols] bf16; b: [cols] fp32 -> [N_p, cols] bf16.

    cols = (R+1)*Dout_p:  Y = X @ [W_1 | ... | W_R | W_root] + b  (b folds the input
    nn.Linear for the first layer, zeros otherwise)."""
    n_p, din_p = x_p.shape
    cols = w_big_bf16.shape[1]
    tm = _pick_tile(n_p, 512)
    tn = _pick_tile(cols, 512)   # column tiling: resident W block is din_p*tn*2 bytes
    # TODO(synk): also tile din_p (K) with an fp32 acc scratch if the input dim grows large.
    bytes_blocks = 2 * (tm * din_p * 2 + din_p * tn * 2 + 8 * tn * 4 + tm * tn * 2)
    flops = 2 * n_p * din_p * cols
    bytes_accessed = (n_p * din_p * 2 * (cols // tn)      # X re-read per column tile
                      + din_p * cols * 2 * (n_p // tm)    # W re-read per row tile
                      + cols * 4 + n_p * cols * 2)
    return pl.pallas_call(
        _project_kernel,
        out_shape=jax.ShapeDtypeStruct((n_p, cols), jnp.bfloat16),
        grid=(n_p // tm, cols // tn),
        in_specs=[pl.BlockSpec((tm, din_p), lambda i, j: (i, 0)),
                  pl.BlockSpec((din_p, tn), lambda i, j: (0, j)),
                  pl.BlockSpec((1, tn), lambda i, j: (0, j))],
        out_specs=pl.BlockSpec((tm, tn), lambda i, j: (i, j)),
        compiler_params=_compiler_params(("parallel", "parallel"), bytes_blocks),
        cost_estimate=pl.CostEstimate(flops=flops, transcendentals=0,
                                      bytes_accessed=bytes_accessed),
    )(x_p.astype(jnp.bfloat16), w_big_bf16,
      b_row_f32.reshape(1, cols).astype(jnp.float32))


def _rgcn_agg_kernel(a_ref, y_ref, yroot_ref, b_ref, o_ref, acc_ref):
    r = pl.program_id(1)
    k = pl.program_id(2)

    @pl.when((r == 0) & (k == 0))
    def _():
        # Root transform + bias folded into the pipelined init (no epilogue matmul).
        acc_ref[...] = yroot_ref[...].astype(jnp.float32) + b_ref[...]

    # out_tile += A[r, dst_tile, src_tile] @ Y[src_tile, r-slice]   (fp32 accumulate)
    acc_ref[...] += jnp.dot(a_ref[...], y_ref[...],
                            preferred_element_type=jnp.float32)

    @pl.when((r == pl.num_programs(1) - 1) & (k == pl.num_programs(2) - 1))
    def _():
        o_ref[...] = jnp.maximum(acc_ref[...], 0.0).astype(o_ref.dtype)


def rgcn_aggregate_relu(adj_bf16, y_bf16, b_p, n_rel, dout_p, out_dtype):
    R, n_p, _ = adj_bf16.shape
    # Grow the dst tile (tm) before the contraction tile (tk): Y re-read traffic scales
    # with n_p/tm while A traffic is fixed.
    tm = _pick_tile(n_p, 512)
    tk = _pick_tile(n_p, 512)
    out_bytes = 4 if out_dtype == jnp.float32 else 2
    flops = 2 * R * n_p * n_p * dout_p
    bytes_accessed = (R * n_p * n_p * 2                     # A, read once
                      + (n_p // tm) * R * n_p * dout_p * 2  # Y re-read per dst tile
                      + n_p * dout_p * 2                    # root slice of Y
                      + dout_p * 4 + n_p * dout_p * out_bytes)
    bytes_blocks = (2 * (tm * tk * 2 + tk * dout_p * 2 + tm * dout_p * 2
                         + 8 * dout_p * 4 + tm * dout_p * out_bytes)
                    + tm * dout_p * 4)
    return pl.pallas_call(
        _rgcn_agg_kernel,
        out_shape=jax.ShapeDtypeStruct((n_p, dout_p), out_dtype),
        grid_spec=pltpu.PrefetchScalarGridSpec(
            num_scalar_prefetch=0,
            grid=(n_p // tm, R, n_p // tk),          # dst tiles, relations, src tiles
            in_specs=[
                # A[r, dst_tile, src_tile] — relation dim squeezed out of the kernel Ref.
                pl.BlockSpec((None, tm, tk), lambda i, r, k: (r, i, k)),
                # Y[src_tile, r*Dout_p:(r+1)*Dout_p]
                pl.BlockSpec((tk, dout_p), lambda i, r, k: (k, r)),
                # root slice Y[dst_tile, R*Dout_p:] — resident across r, k
                pl.BlockSpec((tm, dout_p), lambda i, r, k: (i, n_rel)),
                pl.BlockSpec((1, dout_p), lambda i, r, k: (0, 0)),
            ],
            out_specs=pl.BlockSpec((tm, dout_p), lambda i, r, k: (i, 0)),
            scratch_shapes=[pltpu.VMEM((tm, dout_p), jnp.float32)],
        ),
        compiler_params=_compiler_params(("parallel", "arbitrary", "arbitrary"),
                                         bytes_blocks),
        cost_estimate=pl.CostEstimate(flops=flops, transcendentals=0,
                                      bytes_accessed=bytes_accessed),
    )(adj_bf16, y_bf16, y_bf16, b_p.reshape(1, dout_p).astype(jnp.float32))


# ------------------------------------------------------------------ glue (plain JAX)

def build_norm_adj(edge_index, edge_type, num_nodes_padded, num_relations):
    """A[r, dst, src] = 1/deg_r(dst) (mean over incoming edges per relation), built
    directly in bf16 — no fp32 [R, N_p, N_p] intermediate."""
    src, dst = edge_index[0], edge_index[1]
    deg = jnp.zeros((num_relations, num_nodes_padded), jnp.float32)
    deg = deg.at[edge_type, dst].add(1.0)                     # per-(rel, dst) in-degree
    inv = 1.0 / jnp.maximum(deg, 1.0)
    vals = inv[edge_type, dst].astype(jnp.bfloat16)           # [E]
    adj = jnp.zeros((num_relations, num_nodes_padded, num_nodes_padded), jnp.bfloat16)
    adj = adj.at[edge_type, dst, src].add(vals)
    return adj


def xavier_normal(key, shape, fan_in, fan_out):
    std = jnp.sqrt(2.0 / (fan_in + fan_out)).astype(jnp.float32)
    return std * jax.random.normal(key, shape, jnp.float32)


def init_rgcn_weights(key, n_entities, n_relations, gcn_dim_init, hidden, n_conv_layers):
    keys = jax.random.split(key, 3 + 3 * n_conv_layers)
    w = {}
    w["node_emb"] = xavier_normal(keys[0], (n_entities, gcn_dim_init),
                                  n_entities, gcn_dim_init)
    # torch.nn.Linear(hidden, hidden): weight [out, in]; stored transposed [in, out]
    w["input_lin_w_t"] = xavier_normal(keys[1], (hidden, hidden), hidden, hidden)
    w["input_lin_b"] = jnp.zeros((hidden,), jnp.float32)
    convs = []
    din = gcn_dim_init
    for li in range(n_conv_layers):
        dout = hidden
        kw, kr = keys[3 + 3 * li], keys[4 + 3 * li]
        convs.append({
            "w": xavier_normal(kw, (n_relations, din, dout), din, dout),
            "w_root": xavier_normal(kr, (din, dout), din, dout),
            "b": jnp.zeros((dout,), jnp.float32),
        })
        din = dout
    w["conv_layers"] = convs
    return w


def rgcn_forward(weights, node_index, edge_index, edge_type, n_relations,
                 transform_input=True):
    x = weights["node_emb"][node_index]                 # embedding gather (plain XLA)
    n_nodes, d0 = x.shape
    hidden = weights["conv_layers"][0]["w"].shape[2]

    n_p = _round_up(n_nodes, LANE)
    d0_p = _round_up(d0, LANE)
    x_p = _pad2(x, n_p, d0_p)                           # zero-pad to lane-dense shapes

    adj_bf16 = build_norm_adj(edge_index, edge_type, n_p, n_relations)

    din_p = d0_p
    n_layers = len(weights["conv_layers"])
    for li, layer in enumerate(weights["conv_layers"]):
        din, dout = layer["w"].shape[1], layer["w"].shape[2]
        dout_p = _round_up(dout, LANE)
        cols = (n_relations + 1) * dout_p

        # W_big = [W_1 | ... | W_R | W_root]   (fp32, padded, lane-dense)
        w_pad = jnp.pad(layer["w"], ((0, 0), (0, din_p - din), (0, dout_p - dout)))
        wroot_pad = _pad2(layer["w_root"], din_p, dout_p)
        w_big = jnp.concatenate(
            [w_pad.transpose(1, 0, 2).reshape(din_p, n_relations * dout_p),
             wroot_pad], axis=1)                                  # fp32 [din_p, cols]
        b_row = jnp.zeros((cols,), jnp.float32)

        if li == 0 and transform_input:
            # Fold the input nn.Linear into the first projection (pure linears, no
            # activation between):  (X @ Win^T + b_in) @ W_big
            #                     = X @ (Win^T @ W_big) + (b_in @ W_big)
            w_in_t_p = _pad2(weights["input_lin_w_t"], din_p, din_p)
            b_in_p = _pad1(weights["input_lin_b"], din_p)
            b_row = b_in_p @ w_big
            w_big = w_in_t_p @ w_big

        y = rgcn_project(x_p, w_big.astype(jnp.bfloat16), b_row)   # [N_p, cols] bf16

        # bf16 outputs for all non-final layers; fp32 accumulation stays in VMEM scratch.
        out_dtype = jnp.float32 if li == n_layers - 1 else jnp.bfloat16
        b_pad = _pad1(layer["b"], dout_p)
        x_p = rgcn_aggregate_relu(adj_bf16, y, b_pad, n_relations, dout_p, out_dtype)
        din_p = dout_p
        # F.dropout(..., training=False) -> identity (eval mode)

    return x_p[:n_nodes, :hidden]


# ------------------------------------------------------------------ main

if __name__ == "__main__":
    n_entities = 64
    n_relations = 4
    gcn_dim_init = 32
    hidden = 32
    conv_layers_param = 3          # => 1 + (conv_layers - 2) = 2 RGCNConv layers
    n_conv = 1 + (conv_layers_param - 2)
    n_nodes = 16
    n_edges = 48

    key = jax.random.PRNGKey(0)
    k_w, k_idx, k_src, k_dst, k_rel = jax.random.split(key, 5)

    weights = init_rgcn_weights(k_w, n_entities, n_relations,
                                gcn_dim_init, hidden, n_conv)

    node_index = jax.random.randint(k_idx, (n_nodes,), 0, n_entities)
    edge_index = jnp.stack([
        jax.random.randint(k_src, (n_edges,), 0, n_nodes),
        jax.random.randint(k_dst, (n_edges,), 0, n_nodes),
    ], axis=0)
    edge_type = jax.random.randint(k_rel, (n_edges,), 0, n_relations)

    out = rgcn_forward(weights, node_index, edge_index, edge_type,
                       n_relations, transform_input=True)
    out = jax.block_until_ready(out)

    assert out.shape == (n_nodes, hidden), out.shape
    assert bool(jnp.all(jnp.isfinite(out)))
    print("KERNEL_OK")
</pallas_src>

<mosaic_0001>
module attributes {stable_mosaic.version = 11 : i64} {
  func.func @_project_kernel(%arg0: i32, %arg1: i32, %arg2: memref<128x128xbf16, #tpu.memory_space<vmem>>, %arg3: memref<128x128xbf16, #tpu.memory_space<vmem>>, %arg4: memref<1x128xf32, #tpu.memory_space<vmem>>, %arg5: memref<128x128xbf16, #tpu.memory_space<vmem>>) attributes {dimension_semantics = [#tpu.dimension_semantics<parallel>, #tpu.dimension_semantics<parallel>], iteration_bounds = array<i64: 1, 5>, scalar_prefetch = 0 : i64, scratch_operands = 0 : i64, tpu.core_type = #tpu.core_type<tc>, window_params = [{transform_indices = @transform_0, window_bounds = array<i64: 128, 128>}, {transform_indices = @transform_1, window_bounds = array<i64: 128, 128>}, {transform_indices = @transform_2, window_bounds = array<i64: 1, 128>}, {transform_indices = @transform_3, window_bounds = array<i64: 128, 128>}]} {
    %c0 = arith.constant 0 : index
    %c0_0 = arith.constant 0 : index
    %0 = vector.load %arg2[%c0, %c0_0] : memref<128x128xbf16, #tpu.memory_space<vmem>>, vector<128x128xbf16>
    %c0_1 = arith.constant 0 : index
    %c0_2 = arith.constant 0 : index
    %1 = vector.load %arg3[%c0_1, %c0_2] : memref<128x128xbf16, #tpu.memory_space<vmem>>, vector<128x128xbf16>
    %cst = arith.constant dense<0.000000e+00> : vector<128x128xf32>
    %2 = tpu.matmul %0, %1, %cst {dimension_numbers = #tpu.dot_dimension_numbers<[1], [0], [0], [1], [0, 0, 1, 1], [], []>} : vector<128x128xbf16>, vector<128x128xbf16>, vector<128x128xf32> -> vector<128x128xf32>
    %c0_3 = arith.constant 0 : index
    %c0_4 = arith.constant 0 : index
    %3 = vector.load %arg4[%c0_3, %c0_4] : memref<1x128xf32, #tpu.memory_space<vmem>>, vector<1x128xf32>
    %4 = vector.broadcast %3 : vector<1x128xf32> to vector<128x128xf32>
    %5 = arith.addf %2, %4 : vector<128x128xf32>
    %6 = arith.truncf %5 : vector<128x128xf32> to vector<128x128xbf16>
    %c0_5 = arith.constant 0 : index
    %c0_6 = arith.constant 0 : index
    %7 = vector.load %arg5[%c0_5, %c0_6] : memref<128x128xbf16, #tpu.memory_space<vmem>>, vector<128x128xbf16>
    tpu.vector_store %arg5[%c0_5, %c0_6], %6 {strides = array<i32>} : memref<128x128xbf16, #tpu.memory_space<vmem>>, vector<128x128xbf16>,
    return
  }
  func.func @transform_0(%arg0: i32, %arg1: i32) -> (i32, i32) {
    %c0_i32 = arith.constant 0 : i32
    %c0_i32_0 = arith.constant 0 : i32
    return %arg0, %c0_i32 : i32, i32
  }
  func.func @transform_1(%arg0: i32, %arg1: i32) -> (i32, i32) {
    %c0_i32 = arith.constant 0 : i32
    %c0_i32_0 = arith.constant 0 : i32
    return %c0_i32, %arg1 : i32, i32
  }
  func.func @transform_2(%arg0: i32, %arg1: i32) -> (i32, i32) {
    %c0_i32 = arith.constant 0 : i32
    %c0_i32_0 = arith.constant 0 : i32
    return %c0_i32, %arg1 : i32, i32
  }
  func.func @transform_3(%arg0: i32, %arg1: i32) -> (i32, i32) {
    %c0_i32 = arith.constant 0 : i32
    return %arg0, %arg1 : i32, i32
  }
}

</mosaic_0001>

<llo_original>
// kernel: tpu_custom_call.1
$region0: #{tpu_custom_call.1}
  #allocation0 [shape = 'u32[]', space=smem, size = 0x4, offset = 0x4, fixed_abs, tag = 'smem constant byte address 0x4 - core index']
  #allocation1 [shape = 'u32[144,128]{1,0:T(1,128)}', space=vmem, size = 0x12000, scoped, tag = 'internal scratch']
  %s0 = inlined_call_operand.hbm [shape: bf16[128,128], index: 0, kind: input, shape index: {}]
  %s1 = inlined_call_operand.hbm [shape: bf16[128,640], index: 1, kind: input, shape index: {}]
  %s2 = inlined_call_operand.vmem [shape: f32[1,640], index: 2, kind: input, shape index: {}]
  %s3 = inlined_call_operand.hbm [shape: bf16[128,640], index: 3, kind: output, shape index: {}]
  %s4 = sld [smem:[#allocation0]]
  $region53: #{tpu_custom_call.1} parent=0
    _
  %s6 = ssub.s32 1, %s4
  %s7 = scalar_select 0, %s6, %s4
  $region1: #{tpu_custom_call.1} parent=0
    #allocation2 [shape = 'u8[32768]{0}', space=vmem, size = 0x8000, scoped, tag = 'input window, operand 0, single buffered']
    #allocation3 [shape = 's32[2]{0}', space=sflag, size = 0x8, scoped, tag = 'scoped memory for tpu_custom_call.1']
    #allocation4 [shape = 's32[2]{0}', space=sflag, size = 0x8, scoped, tag = 'scoped memory for tpu_custom_call.1']
    #allocation5 [shape = 'u8[65536]{0}', space=vmem, size = 0x10000, scoped, tag = 'input window, operand 1']
    #allocation6 [shape = 's32[2]{0}', space=sflag, size = 0x8, scoped, tag = 'scoped memory for tpu_custom_call.1']
    #allocation7 [shape = 'u8[65536]{0}', space=vmem, size = 0x10000, scoped, tag = 'output window, operand 0']
    %8 = vsyncpa [#allocation3], 0
    %9 = vsyncpa [#allocation6], 0
    %s10 = scalar_lea.sflag [#allocation6], 1
    %11 = vsyncpa %s10, 0
    %12 = vsyncpa [#allocation4], 0
    %s13 = scalar_lea.sflag [#allocation4], 1
    %14 = vsyncpa %s13, 0
    loop: start=0, step=1, limit=7
    $region2: #{tpu_custom_call.1} parent=1 // loop_pre_header
      _
    $region3: #{tpu_custom_call.1} parent=1 // loop_header
      %s16 = sphi 0, %s20
      %p17 = scmp.ge.s32.totalorder %s16, 7
      %s23 = sphi 0, %s35
      %s24 = sphi 0, %s31
      %s25 = sphi 0, %s23
      %s26 = sphi 0, %s24
      %s27 = sphi 0, %s25
      %s28 = sphi 0, %s26
      %s38 = sphi 0, %s40
      %s41 = sphi 0, %s38
      %s42 = sphi 0, %s41
      %s58 = sphi 0, %s42
      %s64 = sphi 0, %s66
      %s67 = sphi 0, %s64
      %s68 = sphi 0, %s67
      %s84 = sphi 0, %s68
      %s90 = sphi 0, %s92
      %s93 = sphi 0, %s90
      %s94 = sphi 0, %s93
      %s110 = sphi 0, %s94
      %s118 = sphi 0, %s120
      %s121 = sphi 0, %s118
      %s122 = sphi 0, %s121
      %s138 = sphi 0, %s122
    $region4: #{tpu_custom_call.1} parent=1 // loop_header_branch
      %19 = sbr.rel (%p17) target = $region8
    $region5: #{tpu_custom_call.1} parent=1 // loop_body
      %s21 = ssub.s32 %s16, 1
      %s22 = ssub.s32 %s16, 2
      %s29 = sadd.s32 1, %s24
      %p30 = scmp.ge.s32.totalorder %s29, 5
      %s31 = scalar_select %p30, 0, %s29
      %s32 = sadd.s32 1, %s23
      %s33 = scalar_select %p30, %s32, %s23
      %p34 = scmp.ge.s32.totalorder %s33, 1
      %s35 = scalar_select %p34, 0, %s33
      %s36 = ssub.s32 %s23, %s35
      %p37 = scmp.eq.s32.totalorder %s36, 0
      %s39 = sadd.s32 %s38, 1
      %s40 = scalar_select %p37, %s38, %s39
      %p43 = pneg %p37
      %p44 = scmp.eq.s32.totalorder %s16, 4
      %p45 = por %p43, %p44
      %p46 = scmp.ne.s32.totalorder %s38, %s41
      %p47 = scmp.eq.s32.totalorder %s16, 0
      %p48 = por %p46, %p47
      %p49 = scmp.ne.s32.totalorder %s38, %s41
      %p50 = scmp.eq.s32.totalorder %s21, 4
      %p51 = por %p49, %p50
      %p52 = scmp.ne.s32.totalorder %s41, %s42
      %p53 = scmp.eq.s32.totalorder %s21, 0
      %p54 = por %p52, %p53
      %p55 = scmp.ne.s32.totalorder %s41, %s42
      %p56 = scmp.eq.s32.totalorder %s22, 4
      %p57 = por %p55, %p56
      %p59 = scmp.ne.s32.totalorder %s42, %s58
      %p60 = scmp.eq.s32.totalorder %s22, 0
      %p61 = por %p59, %p60
      %s62 = ssub.s32 %s24, %s31
      %p63 = scmp.eq.s32.totalorder %s62, 0
      %s65 = sadd.s32 %s64, 1
      %s66 = scalar_select %p63, %s64, %s65
      %p69 = pneg %p63
      %p70 = scmp.eq.s32.totalorder %s16, 4
      %p71 = por %p69, %p70
      %p72 = scmp.ne.s32.totalorder %s64, %s67
      %p73 = scmp.eq.s32.totalorder %s16, 0
      %p74 = por %p72, %p73
      %p75 = scmp.ne.s32.totalorder %s64, %s67
      %p76 = scmp.eq.s32.totalorder %s21, 4
      %p77 = por %p75, %p76
      %p78 = scmp.ne.s32.totalorder %s67, %s68
      %p79 = scmp.eq.s32.totalorder %s21, 0
      %p80 = por %p78, %p79
      %p81 = scmp.ne.s32.totalorder %s67, %s68
      %p82 = scmp.eq.s32.totalorder %s22, 4
      %p83 = por %p81, %p82
      %p85 = scmp.ne.s32.totalorder %s68, %s84
      %p86 = scmp.eq.s32.totalorder %s22, 0
      %p87 = por %p85, %p86
      %s88 = ssub.s32 %s24, %s31
      %p89 = scmp.eq.s32.totalorder %s88, 0
      %s91 = sadd.s32 %s90, 1
      %s92 = scalar_select %p89, %s90, %s91
      %p95 = pneg %p89
      %p96 = scmp.eq.s32.totalorder %s16, 4
      %p97 = por %p95, %p96
      %p98 = scmp.ne.s32.totalorder %s90, %s93
      %p99 = scmp.eq.s32.totalorder %s16, 0
      %p100 = por %p98, %p99
      %p101 = scmp.ne.s32.totalorder %s90, %s93
      %p102 = scmp.eq.s32.totalorder %s21, 4
      %p103 = por %p101, %p102
      %p104 = scmp.ne.s32.totalorder %s93, %s94
      %p105 = scmp.eq.s32.totalorder %s21, 0
      %p106 = por %p104, %p105
      %p107 = scmp.ne.s32.totalorder %s93, %s94
      %p108 = scmp.eq.s32.totalorder %s22, 4
      %p109 = por %p107, %p108
      %p111 = scmp.ne.s32.totalorder %s94, %s110
      %p112 = scmp.eq.s32.totalorder %s22, 0
      %p113 = por %p111, %p112
      %s114 = ssub.s32 %s23, %s35
      %s115 = ssub.s32 %s24, %s31
      %s116 = sor.u32 %s114, %s115
      %p117 = scmp.eq.s32.totalorder %s116, 0
      %s119 = sadd.s32 %s118, 1
      %s120 = scalar_select %p117, %s118, %s119
      %p123 = pneg %p117
      %p124 = scmp.eq.s32.totalorder %s16, 4
      %p125 = por %p123, %p124
      %p126 = scmp.ne.s32.totalorder %s118, %s121
      %p127 = scmp.eq.s32.totalorder %s16, 0
      %p128 = por %p126, %p127
      %p129 = scmp.ne.s32.totalorder %s118, %s121
      %p130 = scmp.eq.s32.totalorder %s21, 4
      %p131 = por %p129, %p130
      %p132 = scmp.ne.s32.totalorder %s121, %s122
      %p133 = scmp.eq.s32.totalorder %s21, 0
      %p134 = por %p132, %p133
      %p135 = scmp.ne.s32.totalorder %s121, %s122
      %p136 = scmp.eq.s32.totalorder %s22, 4
      %p137 = por %p135, %p136
      %p139 = scmp.ne.s32.totalorder %s122, %s138
      %p140 = scmp.eq.s32.totalorder %s22, 0
      %p141 = por %p139, %p140
      %p142 = scmp.le.s32.totalorder 1, %s16
      %p143 = scmp.lt.s32.totalorder %s16, 6
      %p144 = pnand %p142, %p143
      %p145 = pneg %p144
      // Predicated region
      $region9: #{tpu_custom_call.1} parent=5 // pred_check
        _
      $region10: #{tpu_custom_call.1} parent=5 // pred_check_branch
        %147 = sbr.rel (%p144) target = $region12
      $region11: #{tpu_custom_call.1} parent=5 // pred_region
        %s148 = ssub.s32 %s16, 1
        // Predicated region
        $region13: #{tpu_custom_call.1} parent=11 // pred_check
          %p149 = pneg %p54
        $region14: #{tpu_custom_call.1} parent=11 // pred_check_branch
          %151 = sbr.rel (%p149) target = $region16
        $region15: #{tpu_custom_call.1} parent=11 // pred_region
          %s152 = smul.u32 16, %s25
          %s154 = ssub.s32 1024, 1024
          %155 = vsyncadd [#allocation3], %s154
          %s156 = smul.addr %s152, 64
          %s157 = scalar_lea.hbm %s0, %s156
          %s158 = sshll.u32 [#allocation2], 4
          %s159 = int_to_ptr.vmem [resolvable:$true] %s158
          %164 = dma.hbm_to_vmem [thread:$0]  %s157, 1024, %s159, [#allocation3], 64, 64, 4
        $region16: #{tpu_custom_call.1} parent=11 // pred_fallthru
          _
      $region12: #{tpu_custom_call.1} parent=5 // pred_fallthru
        _
      %p165 = scmp.lt.s32.totalorder %s16, 5
      // Predicated region
      $region17: #{tpu_custom_call.1} parent=5 // pred_check
        %p166 = pneg %p165
      $region18: #{tpu_custom_call.1} parent=5 // pred_check_branch
        %168 = sbr.rel (%p166) target = $region20
      $region19: #{tpu_custom_call.1} parent=5 // pred_region
        // Predicated region
        $region21: #{tpu_custom_call.1} parent=19 // pred_check
          %p169 = pneg %p74
        $region22: #{tpu_custom_call.1} parent=19 // pred_check_branch
          %171 = sbr.rel (%p169) target = $region24
        $region23: #{tpu_custom_call.1} parent=19 // pred_region
          %s172 = sand.u32 %s64, 1
          %s173 = scalar_lea.sflag [#allocation6], %s172
          %s174 = sand.u32 %s64, 1
          %s175 = smul.addr %s174, 64
          %s176 = scalar_lea.vmem [#allocation5], %s175
          %s178 = ssub.s32 1024, 1024
          %179 = vsyncadd %s173, %s178
          %s180 = smul.addr %s24, 64
          %s181 = scalar_lea.hbm %s1, %s180
          %s182 = sshll.u32 %s176, 4
          %s183 = int_to_ptr.vmem [resolvable:$true] %s182
          %188 = dma.hbm_to_vmem [thread:$0]  %s181, 1024, %s183, %s173, 320, 64, 4
        $region24: #{tpu_custom_call.1} parent=19 // pred_fallthru
          _
        // Predicated region
        $region25: #{tpu_custom_call.1} parent=19 // pred_check
          %p189 = pneg %p100
        $region26: #{tpu_custom_call.1} parent=19 // pred_check_branch
          %191 = sbr.rel (%p189) target = $region28
        $region27: #{tpu_custom_call.1} parent=19 // pred_region
          %p192 = scmp.lt.s32.totalorder %s24, 4
          %s193 = scalar_select %p192, %s24, 4
          %s194 = scalar_lea.vmem %s2, %s193
        $region28: #{tpu_custom_call.1} parent=19 // pred_fallthru
          _
      $region20: #{tpu_custom_call.1} parent=5 // pred_fallthru
        _
      %p195 = scmp.le.s32.totalorder 1, %s16
      %p196 = scmp.lt.s32.totalorder %s16, 6
      %p197 = pnand %p195, %p196
      %p198 = pneg %p197
      // Predicated region
      $region29: #{tpu_custom_call.1} parent=5 // pred_check
        _
      $region30: #{tpu_custom_call.1} parent=5 // pred_check_branch
        %200 = sbr.rel (%p197) target = $region32
      $region31: #{tpu_custom_call.1} parent=5 // pred_region
        %s201 = ssub.s32 %s16, 1
        // Predicated region
        $region33: #{tpu_custom_call.1} parent=31 // pred_check
          %p202 = pneg %p54
        $region34: #{tpu_custom_call.1} parent=31 // pred_check_branch
          %204 = sbr.rel (%p202) target = $region36
        $region35: #{tpu_custom_call.1} parent=31 // pred_region
          %205 = dma.done [#allocation3], 1024
        $region36: #{tpu_custom_call.1} parent=31 // pred_fallthru
          _
        %s206 = sand.u32 %s67, 1
        %s207 = scalar_lea.sflag [#allocation6], %s206
        %s208 = sand.u32 %s67, 1
        %s209 = smul.addr %s208, 64
        %s210 = scalar_lea.vmem [#allocation5], %s209
        // Predicated region
        $region37: #{tpu_custom_call.1} parent=31 // pred_check
          %p211 = pneg %p80
        $region38: #{tpu_custom_call.1} parent=31 // pred_check_branch
          %213 = sbr.rel (%p211) target = $region40
        $region39: #{tpu_custom_call.1} parent=31 // pred_region
          %214 = dma.done %s207, 1024
        $region40: #{tpu_custom_call.1} parent=31 // pred_fallthru
          _
        %p215 = pneg %p54
        %p216 = pneg %p51
        %s217 = sand.u32 %s67, 1
        %s218 = scalar_lea.sflag [#allocation6], %s217
        %s219 = sand.u32 %s67, 1
        %s220 = smul.addr %s219, 64
        %s221 = scalar_lea.vmem [#allocation5], %s220
        %p222 = pneg %p80
        %p223 = pneg %p77
        %p224 = scmp.lt.s32.totalorder %s26, 4
        %s225 = scalar_select %p224, %s26, 4
        %s226 = scalar_lea.vmem %s2, %s225
        %p227 = pneg %p106
        %p228 = pneg %p103
        %p229 = pneg %p134
        %p230 = pneg %p131
        %s231 = sand.u32 %s121, 1
        %s232 = scalar_lea.sflag [#allocation4], %s231
        %s233 = sand.u32 %s121, 1
        %s234 = smul.addr %s233, 64
        %s235 = scalar_lea.vmem [#allocation7], %s234
        %s236 = smul.u32 16, %s25
        %p237 = scmp.lt.s32.totalorder %s26, 4
        %s238 = scalar_select %p237, %s26, 4
        %s239 = scalar_lea.vmem %s2, %s238
        %s240 = smul.u32 16, %s25
        %v242 = vld [vmem:[#allocation2] sm:$0xf]
        %v243 = vld [vmem:[#allocation2 + $0x4] sm:$0xf]
        %v244 = vld [vmem:[#allocation2 + $0x8] sm:$0xf]
        %v245 = vld [vmem:[#allocation2 + $0xc] sm:$0xf]
        %v246 = vld [vmem:[#allocation2 + $0x10] sm:$0xf]
        %v247 = vld [vmem:[#allocation2 + $0x14] sm:$0xf]
        %v248 = vld [vmem:[#allocation2 + $0x18] sm:$0xf]
        %v249 = vld [vmem:[#allocation2 + $0x1c] sm:$0xf]
        %v250 = vld [vmem:[#allocation2 + $0x20] sm:$0xf]
        %v251 = vld [vmem:[#allocation2 + $0x24] sm:$0xf]
        %v252 = vld [vmem:[#allocation2 + $0x28] sm:$0xf]
        %v253 = vld [vmem:[#allocation2 + $0x2c] sm:$0xf]
        %v254 = vld [vmem:[#allocation2 + $0x30] sm:$0xf]
        %v255 = vld [vmem:[#allocation2 + $0x34] sm:$0xf]
        %v256 = vld [vmem:[#allocation2 + $0x38] sm:$0xf]
        %v257 = vld [vmem:[#allocation2 + $0x3c] sm:$0xf]
        %v258 = vld [vmem:[%s210] sm:$0xf]
        %v259 = vld [vmem:[%s210 + $0x4] sm:$0xf]
        %v260 = vld [vmem:[%s210 + $0x8] sm:$0xf]
        %v261 = vld [vmem:[%s210 + $0xc] sm:$0xf]
        %v262 = vld [vmem:[%s210 + $0x10] sm:$0xf]
        %v263 = vld [vmem:[%s210 + $0x14] sm:$0xf]
        %v264 = vld [vmem:[%s210 + $0x18] sm:$0xf]
        %v265 = vld [vmem:[%s210 + $0x1c] sm:$0xf]
        %v266 = vld [vmem:[%s210 + $0x20] sm:$0xf]
        %v267 = vld [vmem:[%s210 + $0x24] sm:$0xf]
        %v268 = vld [vmem:[%s210 + $0x28] sm:$0xf]
        %v269 = vld [vmem:[%s210 + $0x2c] sm:$0xf]
        %v270 = vld [vmem:[%s210 + $0x30] sm:$0xf]
        %v271 = vld [vmem:[%s210 + $0x34] sm:$0xf]
        %v272 = vld [vmem:[%s210 + $0x38] sm:$0xf]
        %v273 = vld [vmem:[%s210 + $0x3c] sm:$0xf]
        %v274 = vld [vmem:[%s239] sm:$0x1]
        %v276 = vlaneseq
        %v277 = vshrl.u32 %v276, 7
        %v278 = vsub.s32 0, %v277
        %v279 = vrot.slane %v274, %v278
        %v297 = vunpack.c.l.b16 %v242
        %v298 = vunpack.c.l.b16 %v243
        %v299 = vunpack.c.l.b16 %v244
        %v300 = vunpack.c.l.b16 %v245
        %v301 = vunpack.c.l.b16 %v246
        %v302 = vunpack.c.l.b16 %v247
        %v303 = vunpack.c.l.b16 %v248
        %v304 = vunpack.c.l.b16 %v249
        %v305 = vunpack.c.l.b16 %v250
        %v306 = vunpack.c.l.b16 %v251
        %v307 = vunpack.c.l.b16 %v252
        %v308 = vunpack.c.l.b16 %v253
        %v309 = vunpack.c.l.b16 %v254
        %v310 = vunpack.c.l.b16 %v255
        %v311 = vunpack.c.l.b16 %v256
        %v312 = vunpack.c.l.b16 %v257
        %v313 = vpack.c.b16 %v298, %v297
        %v314 = vpack.c.b16 %v300, %v299
        %v315 = vpack.c.b16 %v302, %v301
        %v316 = vpack.c.b16 %v304, %v303
        %v317 = vpack.c.b16 %v306, %v305
        %v318 = vpack.c.b16 %v308, %v307
        %v319 = vpack.c.b16 %v310, %v309
        %v320 = vpack.c.b16 %v312, %v311
        %v345 = vunpack.c.l.b16 %v258
        %v346 = vunpack.c.l.b16 %v259
        %v347 = vunpack.c.l.b16 %v260
        %v348 = vunpack.c.l.b16 %v261
        %v349 = vunpack.c.l.b16 %v262
        %v350 = vunpack.c.l.b16 %v263
        %v351 = vunpack.c.l.b16 %v264
        %v352 = vunpack.c.l.b16 %v265
        %v353 = vunpack.c.l.b16 %v266
        %v354 = vunpack.c.l.b16 %v267
        %v355 = vunpack.c.l.b16 %v268
        %v356 = vunpack.c.l.b16 %v269
        %v357 = vunpack.c.l.b16 %v270
        %v358 = vunpack.c.l.b16 %v271
        %v359 = vunpack.c.l.b16 %v272
        %v360 = vunpack.c.l.b16 %v273
        %v361 = vpack.c.b16 %v346, %v345
        %v362 = vpack.c.b16 %v348, %v347
        %v363 = vpack.c.b16 %v350, %v349
        %v364 = vpack.c.b16 %v352, %v351
        %v365 = vpack.c.b16 %v354, %v353
        %v366 = vpack.c.b16 %v356, %v355
        %v367 = vpack.c.b16 %v358, %v357
        %v368 = vpack.c.b16 %v360, %v359
        %377 = vmatprep.subr.bf16.mxu0 0
        %378 = vmatpush1.bf16.msra.mxu0 %v361
        %379 = vmatprep.subr.bf16.mxu0 0
        %380 = vmatpush1.bf16.msra.mxu0 %v362
        %381 = vmatprep.subr.bf16.mxu0 0
        %382 = vmatpush1.bf16.msra.mxu0 %v363
        %383 = vmatprep.subr.bf16.mxu0 0
        %384 = vmatpush1.bf16.msra.mxu0 %v364
        %385 = vmatprep.subr.bf16.mxu0 0
        %386 = vmatpush1.bf16.msra.mxu0 %v365
        %387 = vmatprep.subr.bf16.mxu0 0
        %388 = vmatpush1.bf16.msra.mxu0 %v366
        %389 = vmatprep.subr.bf16.mxu0 0
        %390 = vmatpush1.bf16.msra.mxu0 %v367
        %391 = vmatprep.subr.bf16.mxu0 0
        %392 = vmatpush1.bf16.msra.mxu0 %v368
        %393 = vmatprep.subr.bf16.mxu0 0
        %394 = vmatpush1.bf16.msra.mxu0 0
        %395 = vmatprep.subr.bf16.mxu0 0
        %396 = vmatpush1.bf16.msra.mxu0 0
        %397 = vmatprep.subr.bf16.mxu0 0
        %398 = vmatpush1.bf16.msra.mxu0 0
        %399 = vmatprep.subr.bf16.mxu0 0
        %400 = vmatpush1.bf16.msra.mxu0 0
        %401 = vmatprep.subr.bf16.mxu0 0
        %402 = vmatpush1.bf16.msra.mxu0 0
        %403 = vmatprep.subr.bf16.mxu0 0
        %404 = vmatpush1.bf16.msra.mxu0 0
        %405 = vmatprep.subr.bf16.mxu0 0
        %406 = vmatpush1.bf16.msra.mxu0 0
        %407 = vmatprep.subr.bf16.mxu0 0
        %408 = vmatpush1.bf16.msra.mxu0 0
        %409 = vmatprep.mubr.bf16.mxu0 0
        %410 = vmatmul.mubr.bf16.gmra.mrb[0].mxu0 %v313
        %v411 = vpop.f32.mrb[0].mxu0
        %v412 = vadd.f32 %v279, %v411
        %v413 = vpop.f32.mrb[0].mxu0
        %v414 = vpop.f32.mrb[0].mxu0
        %v415 = vadd.f32 %v279, %v414
        %v416 = vpop.f32.mrb[0].mxu0
        %417 = vmatprep.mubr.bf16.mxu0 0
        %418 = vmatmul.mubr.bf16.gmra.mrb[0].mxu0 %v314
        %v419 = vpop.f32.mrb[0].mxu0
        %v420 = vadd.f32 %v279, %v419
        %v421 = vpop.f32.mrb[0].mxu0
        %v422 = vpop.f32.mrb[0].mxu0
        %v423 = vadd.f32 %v279, %v422
        %v424 = vpop.f32.mrb[0].mxu0
        %425 = vmatprep.mubr.bf16.mxu0 0
        %426 = vmatmul.mubr.bf16.gmra.mrb[0].mxu0 %v315
        %v427 = vpop.f32.mrb[0].mxu0
        %v428 = vadd.f32 %v279, %v427
        %v429 = vpop.f32.mrb[0].mxu0
        %v430 = vpop.f32.mrb[0].mxu0
        %v431 = vadd.f32 %v279, %v430
        %v432 = vpop.f32.mrb[0].mxu0
        %433 = vmatprep.mubr.bf16.mxu0 0
        %434 = vmatmul.mubr.bf16.gmra.mrb[0].mxu0 %v316
        %v435 = vpop.f32.mrb[0].mxu0
        %v436 = vadd.f32 %v279, %v435
        %v437 = vpop.f32.mrb[0].mxu0
        %v438 = vpop.f32.mrb[0].mxu0
        %v439 = vadd.f32 %v279, %v438
        %v440 = vpop.f32.mrb[0].mxu0
        %441 = vmatprep.mubr.bf16.mxu0 0
        %442 = vmatmul.mubr.bf16.gmra.mrb[0].mxu0 %v317
        %v443 = vpop.f32.mrb[0].mxu0
        %v444 = vadd.f32 %v279, %v443
        %v445 = vpop.f32.mrb[0].mxu0
        %v446 = vpop.f32.mrb[0].mxu0
        %v447 = vadd.f32 %v279, %v446
        %v448 = vpop.f32.mrb[0].mxu0
        %449 = vmatprep.mubr.bf16.mxu0 0
        %450 = vmatmul.mubr.bf16.gmra.mrb[0].mxu0 %v318
        %v451 = vpop.f32.mrb[0].mxu0
        %v452 = vadd.f32 %v279, %v451
        %v453 = vpop.f32.mrb[0].mxu0
        %v454 = vpop.f32.mrb[0].mxu0
        %v455 = vadd.f32 %v279, %v454
        %v456 = vpop.f32.mrb[0].mxu0
        %457 = vmatprep.mubr.bf16.mxu0 0
        %458 = vmatmul.mubr.bf16.gmra.mrb[0].mxu0 %v319
        %v459 = vpop.f32.mrb[0].mxu0
        %v460 = vadd.f32 %v279, %v459
        %v461 = vpop.f32.mrb[0].mxu0
        %v462 = vpop.f32.mrb[0].mxu0
        %v463 = vadd.f32 %v279, %v462
        %v464 = vpop.f32.mrb[0].mxu0
        %465 = vmatprep.mubr.bf16.mxu0 0
        %466 = vmatmul.mubr.bf16.gmra.mrb[0].mxu0 %v320
        %v467 = vpop.f32.mrb[0].mxu0
        %v468 = vadd.f32 %v279, %v467
        %v469 = vpop.f32.mrb[0].mxu0
        %v470 = vpop.f32.mrb[0].mxu0
        %v471 = vadd.f32 %v279, %v470
        %v472 = vpop.f32.mrb[0].mxu0
        %473 = vdwg.mxu0
        %v474 = vpack.c.bf16 %v415, %v412
        %v475 = vpack.c.bf16 %v423, %v420
        %v476 = vpack.c.bf16 %v431, %v428
        %v477 = vpack.c.bf16 %v439, %v436
        %v478 = vpack.c.bf16 %v447, %v444
        %v479 = vpack.c.bf16 %v455, %v452
        %v480 = vpack.c.bf16 %v463, %v460
        %v481 = vpack.c.bf16 %v471, %v468
        %v490 = vunpack.c.l.b16 %v474
        %v491 = vunpack.c.h.b16 %v474
        %v492 = vunpack.c.l.b16 %v475
        %v493 = vunpack.c.h.b16 %v475
        %v494 = vunpack.c.l.b16 %v476
        %v495 = vunpack.c.h.b16 %v476
        %v496 = vunpack.c.l.b16 %v477
        %v497 = vunpack.c.h.b16 %v477
        %v498 = vunpack.c.l.b16 %v478
        %v499 = vunpack.c.h.b16 %v478
        %v500 = vunpack.c.l.b16 %v479
        %v501 = vunpack.c.h.b16 %v479
        %v502 = vunpack.c.l.b16 %v480
        %v503 = vunpack.c.h.b16 %v480
        %v504 = vunpack.c.l.b16 %v481
        %v505 = vunpack.c.h.b16 %v481
        %v506 = vpack.c.b16 %v490, %v490
        %v507 = vpack.c.b16 %v491, %v491
        %v508 = vpack.c.b16 %v492, %v492
        %v509 = vpack.c.b16 %v493, %v493
        %v510 = vpack.c.b16 %v494, %v494
        %v511 = vpack.c.b16 %v495, %v495
        %v512 = vpack.c.b16 %v496, %v496
        %v513 = vpack.c.b16 %v497, %v497
        %v514 = vpack.c.b16 %v498, %v498
        %v515 = vpack.c.b16 %v499, %v499
        %v516 = vpack.c.b16 %v500, %v500
        %v517 = vpack.c.b16 %v501, %v501
        %v518 = vpack.c.b16 %v502, %v502
        %v519 = vpack.c.b16 %v503, %v503
        %v520 = vpack.c.b16 %v504, %v504
        %v521 = vpack.c.b16 %v505, %v505
        %538 = vst [vmem:[%s235] sm:$0xf] %v506
        %539 = vst [vmem:[%s235 + $0x4] sm:$0xf] %v507
        %540 = vst [vmem:[%s235 + $0x8] sm:$0xf] %v508
        %541 = vst [vmem:[%s235 + $0xc] sm:$0xf] %v509
        %542 = vst [vmem:[%s235 + $0x10] sm:$0xf] %v510
        %543 = vst [vmem:[%s235 + $0x14] sm:$0xf] %v511
        %544 = vst [vmem:[%s235 + $0x18] sm:$0xf] %v512
        %545 = vst [vmem:[%s235 + $0x1c] sm:$0xf] %v513
        %546 = vst [vmem:[%s235 + $0x20] sm:$0xf] %v514
        %547 = vst [vmem:[%s235 + $0x24] sm:$0xf] %v515
        %548 = vst [vmem:[%s235 + $0x28] sm:$0xf] %v516
        %549 = vst [vmem:[%s235 + $0x2c] sm:$0xf] %v517
        %550 = vst [vmem:[%s235 + $0x30] sm:$0xf] %v518
        %551 = vst [vmem:[%s235 + $0x34] sm:$0xf] %v519
        %552 = vst [vmem:[%s235 + $0x38] sm:$0xf] %v520
        %553 = vst [vmem:[%s235 + $0x3c] sm:$0xf] %v521
        %s554 = sand.u32 %s121, 1
        %s555 = scalar_lea.sflag [#allocation4], %s554
        %s556 = sand.u32 %s121, 1
        %s557 = smul.addr %s556, 64
        %s558 = scalar_lea.vmem [#allocation7], %s557
        // Predicated region
        $region41: #{tpu_custom_call.1} parent=31 // pred_check
          %p559 = pneg %p131
        $region42: #{tpu_custom_call.1} parent=31 // pred_check_branch
          %561 = sbr.rel (%p559) target = $region44
        $region43: #{tpu_custom_call.1} parent=31 // pred_region
          %s562 = smul.u32 16, %s25
          %s564 = ssub.s32 1024, 1024
          %565 = vsyncadd %s555, %s564
          %s566 = smul.addr %s562, 5
          %s567 = sadd.s32 %s26, %s566
          %s568 = smul.addr %s567, 64
          %s569 = scalar_lea.hbm %s3, %s568
          %s570 = sshll.u32 %s558, 4
          %s571 = int_to_ptr.vmem [resolvable:$true] %s570
          %576 = dma.vmem_to_hbm [thread:$0]  %s571, 1024, %s569, %s555, 64, 320, 4
        $region44: #{tpu_custom_call.1} parent=31 // pred_fallthru
          _
      $region32: #{tpu_custom_call.1} parent=5 // pred_fallthru
        _
      %p577 = scmp.le.s32.totalorder 2, %s16
      // Predicated region
      $region45: #{tpu_custom_call.1} parent=5 // pred_check
        %p578 = pneg %p577
      $region46: #{tpu_custom_call.1} parent=5 // pred_check_branch
        %580 = sbr.rel (%p578) target = $region48
      $region47: #{tpu_custom_call.1} parent=5 // pred_region
        %s581 = ssub.s32 %s16, 2
        // Predicated region
        $region49: #{tpu_custom_call.1} parent=47 // pred_check
          %p582 = pneg %p137
        $region50: #{tpu_custom_call.1} parent=47 // pred_check_branch
          %584 = sbr.rel (%p582) target = $region52
        $region51: #{tpu_custom_call.1} parent=47 // pred_region
          %s585 = sand.u32 %s122, 1
          %s586 = scalar_lea.sflag [#allocation4], %s585
          %s587 = sand.u32 %s122, 1
          %s588 = smul.addr %s587, 64
          %s589 = scalar_lea.vmem [#allocation7], %s588
          %590 = dma.done %s586, 1024
        $region52: #{tpu_custom_call.1} parent=47 // pred_fallthru
          _
      $region48: #{tpu_custom_call.1} parent=5 // pred_fallthru
        _
    $region6: #{tpu_custom_call.1} parent=1 // loop_footer
      %s20 = sadd.s32 1, %s16
    $region7: #{tpu_custom_call.1} parent=1 // loop_footer_branch
      %15 = sbr.rel target = $region3
    $region8: #{tpu_custom_call.1} parent=1 // loop_exit
      _
    %591 = vsyncpa [#allocation3], 1
    %s592 = scalar_lea.sflag [#allocation3], 1
    %593 = vsyncpa %s592, 1
    %594 = vsyncpa [#allocation6], 1
    %s595 = scalar_lea.sflag [#allocation6], 1
    %596 = vsyncpa %s595, 1
    %597 = vsyncpa [#allocation4], 1
    %s598 = scalar_lea.sflag [#allocation4], 1
    %599 = vsyncpa %s598, 1

</llo_original>
